<compile_context>
chip_gen: v7x
topology: tpu7x:2x2x1
jax: 0.10.0
libtpu: 0.0.40
codegen_flags: <defaults>
</compile_context>

<pallas_src>
import jax
import jax.numpy as jnp
from jax import lax
from jax.experimental import pallas as pl
from jax.experimental.pallas import tpu as pltpu


# ------------------------------ config --------------------------------------
B = 2                  # demo batch
SEQ_IN = 16            # input_ids sequence length used in the demo
L_MAX = 16             # max_input_bp_seq_len
NUM_BASES = 4          # A, C, G, T
K1, K2 = 5, 5          # conv kernel sizes (stride 1, VALID padding)
C0, C1, C2 = NUM_BASES, 8, 16
L1 = L_MAX - K1 + 1    # 12
L2 = L1 - K2 + 1       # 8
FLATTEN = C2 * L2      # 128 == flatten_dim
D_MODEL = 32           # model_dim

# ------------- parameter-slab layout (rows x 128 lanes, bf16) ----------------
# every region starts on an 8-row boundary so in-kernel slices are tile aligned
W1_OFF, W1_ROWS = 0, 24          # rows 4*k + base, lanes 0:C1   (20 used, 4 pad)
W2_OFF, W2_ROWS = 24, K2 * C1    # tap k at rows 24+8k .. +8, lanes 0:C2
WP_OFF = 64                      # (FLATTEN, D_MODEL) pooling weight
B1_OFF, B2_OFF, BP_OFF = 192, 200, 208
SLAB_ROWS, SLAB_LANES = 216, 128


# --------------------------- kernel body -------------------------------------
def cnn_backbone_kernel(ids_ref, slab_ref, out_ref):
    f32, bf16 = jnp.float32, jnp.bfloat16
    rows = ids_ref.shape[0]            # B * L_MAX  (static)
    bsz = out_ref.shape[0]
    assert rows == bsz * L_MAX

    ids = ids_ref[...]                                      # (rows, 1) int32
    # base membership masks; out-of-range ids -> all zero (one-hot semantics)
    masks = [(ids == b).astype(f32) for b in range(NUM_BASES)]

    # ---- conv1: one-hot @ W1 folded into a per-(tap, base) weight-row select.
    # h1[r] = sum_k W1_tap_k[ ids[r + k] ]  ; garbage lands only at l >= L1.
    w1 = slab_ref[W1_OFF:W1_OFF + W1_ROWS, 0:C1].astype(f32)     # (24, C1)
    b1 = slab_ref[B1_OFF:B1_OFF + 1, 0:C1].astype(f32)           # (1, C1)
    acc1 = jnp.zeros((rows, C1), f32)
    for k in range(K1):
        lk = jnp.zeros((rows, C1), f32)
        for b in range(NUM_BASES):
            r0 = NUM_BASES * k + b
            lk = lk + masks[b] * w1[r0:r0 + 1, :]                # VPU mul-add
        acc1 = acc1 + (lk if k == 0 else
                       pltpu.roll(lk, shift=rows - k, axis=0))   # XLU sublane roll
    h1 = jnp.maximum(acc1 + b1, 0.0)                             # (rows, C1) f32

    # ---- conv2: sum of K shifted (rows, C1) @ (C1, C2) bf16 matmuls.
    # valid outputs (l < L2) only read valid h1 rows (l + k <= 11 < L1).
    b2 = slab_ref[B2_OFF:B2_OFF + 1, 0:C2].astype(f32)           # (1, C2)
    acc2 = jnp.zeros((rows, C2), f32)
    for k in range(K2):
        xk = h1 if k == 0 else pltpu.roll(h1, shift=rows - k, axis=0)
        wk = slab_ref[W2_OFF + k * C1:W2_OFF + (k + 1) * C1, 0:C2]   # (C1, C2) bf16
        acc2 = acc2 + jnp.dot(xk.astype(bf16), wk, preferred_element_type=f32)
    h2 = jnp.maximum(acc2 + b2, 0.0)                             # (rows, C2) f32

    # ---- pooling: flatten the L2 valid rows per batch (8-aligned) and one matmul.
    wp = slab_ref[WP_OFF:WP_OFF + FLATTEN, 0:D_MODEL]            # (128, 32) bf16
    bp = slab_ref[BP_OFF:BP_OFF + 1, 0:D_MODEL].astype(f32)      # (1, 32)
    flat = h2.reshape(bsz, L_MAX, C2)[:, :L2, :].reshape(bsz, FLATTEN)
    out_ref[...] = (jnp.dot(flat.astype(bf16), wp,
                            preferred_element_type=f32) + bp)


# --------------------------- host-side helpers --------------------------------
def _pad_or_truncate(input_ids, max_len):
    """Matches PyTorch: keep first max_len tokens / center zero-pad (floor-left)."""
    bsz, seq_len = input_ids.shape
    if seq_len > max_len:
        return input_ids[:, :max_len]
    if seq_len < max_len:
        pad_len = max_len - seq_len
        left = pad_len // 2
        right = pad_len - left
        z = lambda n: jnp.zeros((bsz, n), input_ids.dtype)
        return jnp.concatenate([z(left), input_ids, z(right)], axis=1)
    return input_ids


def pack_params(p):
    """Repack all weights/biases into one bf16 (SLAB_ROWS, 128) VMEM slab."""
    slab = jnp.zeros((SLAB_ROWS, SLAB_LANES), jnp.float32)
    # conv1 (C1, C0, K1) -> row NUM_BASES*k + base, lanes 0:C1
    w1 = jnp.transpose(p["conv1_w"], (2, 1, 0)).reshape(K1 * C0, C1)
    slab = slab.at[W1_OFF:W1_OFF + K1 * C0, 0:C1].set(w1)
    # conv2 (C2, C1, K2) -> per-tap (C1, C2) blocks at rows 24 + 8k
    w2 = jnp.transpose(p["conv2_w"], (2, 1, 0)).reshape(K2 * C1, C2)
    slab = slab.at[W2_OFF:W2_OFF + K2 * C1, 0:C2].set(w2)
    # pooling rows: torch (c*L2 + l) flatten order -> kernel (l*C2 + c) order
    wp = jnp.transpose(p["pool_w"].reshape(C2, L2, D_MODEL),
                       (1, 0, 2)).reshape(FLATTEN, D_MODEL)
    slab = slab.at[WP_OFF:WP_OFF + FLATTEN, 0:D_MODEL].set(wp)
    slab = slab.at[B1_OFF, 0:C1].set(p["conv1_b"])
    slab = slab.at[B2_OFF, 0:C2].set(p["conv2_b"])
    slab = slab.at[BP_OFF, 0:D_MODEL].set(p["pool_b"])
    return slab.astype(jnp.bfloat16)


@jax.jit
def cnn_backbone_forward(input_ids, param_slab):
    ids = _pad_or_truncate(input_ids, L_MAX).astype(jnp.int32)
    bsz = ids.shape[0]
    ids_col = ids.reshape(bsz * L_MAX, 1)          # (B*L_MAX, 1) row-per-position

    flops = 2 * bsz * (L1 * K1 * C0 * C1 + L2 * K2 * C1 * C2 + FLATTEN * D_MODEL)
    bytes_accessed = ids_col.size * 4 + param_slab.size * 2 + bsz * D_MODEL * 4

    rep_seq = pl.pallas_call(
        cnn_backbone_kernel,
        out_shape=jax.ShapeDtypeStruct((bsz, D_MODEL), jnp.float32),
        # no grid / no BlockSpecs: single invocation, full arrays in VMEM (2 DMAs in)
        cost_estimate=pl.CostEstimate(flops=flops, transcendentals=0,
                                      bytes_accessed=bytes_accessed),
    )(ids_col, param_slab)
    return {"rep_seq": rep_seq}


# --------------------------- pure-JAX reference -------------------------------
def reference_forward(input_ids, params):
    ids = _pad_or_truncate(input_ids, L_MAX)
    onehot = jax.nn.one_hot(ids, NUM_BASES, dtype=jnp.float32)        # (B, L, 4)
    x = jnp.transpose(onehot, (0, 2, 1))                              # (B, C, L)
    dn = ("NCH", "OIH", "NCH")
    h = lax.conv_general_dilated(x, params["conv1_w"], (1,), "VALID",
                                 dimension_numbers=dn)
    h = jnp.maximum(h + params["conv1_b"][None, :, None], 0.0)
    h = lax.conv_general_dilated(h, params["conv2_w"], (1,), "VALID",
                                 dimension_numbers=dn)
    h = jnp.maximum(h + params["conv2_b"][None, :, None], 0.0)
    flat = h.reshape(ids.shape[0], -1)                                # torch (C, L) flatten
    return flat @ params["pool_w"] + params["pool_b"][None, :]


# --------------------------- parameter init -----------------------------------
def init_params(key):
    k = jax.random.split(key, 6)
    he1 = (2.0 / (C0 * K1)) ** 0.5
    he2 = (2.0 / (C1 * K2)) ** 0.5
    hep = (1.0 / FLATTEN) ** 0.5
    return dict(
        conv1_w=jax.random.normal(k[0], (C1, C0, K1), jnp.float32) * he1,
        conv1_b=jax.random.normal(k[1], (C1,), jnp.float32) * 0.01,
        conv2_w=jax.random.normal(k[2], (C2, C1, K2), jnp.float32) * he2,
        conv2_b=jax.random.normal(k[3], (C2,), jnp.float32) * 0.01,
        pool_w=jax.random.normal(k[4], (FLATTEN, D_MODEL), jnp.float32) * hep,
        pool_b=jax.random.normal(k[5], (D_MODEL,), jnp.float32) * 0.01,
    )


# ------------------------------- main -----------------------------------------
if __name__ == "__main__":
    key = jax.random.PRNGKey(0)
    pkey, xkey = jax.random.split(key)
    params = init_params(pkey)
    slab = pack_params(params)     # layout plumbing done once, outside the hot path

    input_ids = jax.random.randint(xkey, (B, SEQ_IN), 0, NUM_BASES, dtype=jnp.int32)

    out = cnn_backbone_forward(input_ids, slab)["rep_seq"]
    jax.block_until_ready(out)
    ref = reference_forward(input_ids, params)
    assert out.shape == (B, D_MODEL)
    assert bool(jnp.all(jnp.isfinite(out)))
    rel = float(jnp.linalg.norm(out - ref) / (jnp.linalg.norm(ref) + 1e-12))
    assert rel < 3e-2, f"relative error too large: {rel}"   # bf16 MXU operands

    # shorter sequence exercises the centered-pad branch; checked numerically now
    short_ids = input_ids[:, : SEQ_IN - 5]
    out_s = cnn_backbone_forward(short_ids, slab)["rep_seq"]
    jax.block_until_ready(out_s)
    ref_s = reference_forward(short_ids, params)
    rel_s = float(jnp.linalg.norm(out_s - ref_s) / (jnp.linalg.norm(ref_s) + 1e-12))
    assert out_s.shape == (B, D_MODEL)
    assert bool(jnp.all(jnp.isfinite(out_s)))
    assert rel_s < 3e-2, f"relative error too large (short): {rel_s}"

    print("KERNEL_OK")
</pallas_src>

<mosaic_0001>
module attributes {stable_mosaic.version = 11 : i64} {
  func.func @cnn_backbone_kernel(%arg0: memref<32x1xi32, #tpu.memory_space<vmem>>, %arg1: memref<216x128xbf16, #tpu.memory_space<vmem>>, %arg2: memref<2x32xf32, #tpu.memory_space<vmem>>) attributes {dimension_semantics = [], scalar_prefetch = 0 : i64, scratch_operands = 0 : i64, tpu.core_type = #tpu.core_type<tc>} {
    %c0 = arith.constant 0 : index
    %c0_0 = arith.constant 0 : index
    %0 = vector.load %arg0[%c0, %c0_0] : memref<32x1xi32, #tpu.memory_space<vmem>>, vector<32x1xi32>
    %c0_i32 = arith.constant 0 : i32
    %1 = vector.broadcast %c0_i32 : i32 to vector<32x1xi32>
    %2 = arith.cmpi eq, %0, %1 : vector<32x1xi32>
    %3 = arith.extui %2 : vector<32x1xi1> to vector<32x1xi32>
    %4 = arith.sitofp %3 : vector<32x1xi32> to vector<32x1xf32>
    %c1_i32 = arith.constant 1 : i32
    %5 = vector.broadcast %c1_i32 : i32 to vector<32x1xi32>
    %6 = arith.cmpi eq, %0, %5 : vector<32x1xi32>
    %7 = arith.extui %6 : vector<32x1xi1> to vector<32x1xi32>
    %8 = arith.sitofp %7 : vector<32x1xi32> to vector<32x1xf32>
    %c2_i32 = arith.constant 2 : i32
    %9 = vector.broadcast %c2_i32 : i32 to vector<32x1xi32>
    %10 = arith.cmpi eq, %0, %9 : vector<32x1xi32>
    %11 = arith.extui %10 : vector<32x1xi1> to vector<32x1xi32>
    %12 = arith.sitofp %11 : vector<32x1xi32> to vector<32x1xf32>
    %c3_i32 = arith.constant 3 : i32
    %13 = vector.broadcast %c3_i32 : i32 to vector<32x1xi32>
    %14 = arith.cmpi eq, %0, %13 : vector<32x1xi32>
    %15 = arith.extui %14 : vector<32x1xi1> to vector<32x1xi32>
    %16 = arith.sitofp %15 : vector<32x1xi32> to vector<32x1xf32>
    %c0_1 = arith.constant 0 : index
    %c0_2 = arith.constant 0 : index
    %17 = vector.load %arg1[%c0_1, %c0_2] : memref<216x128xbf16, #tpu.memory_space<vmem>>, vector<24x8xbf16>
    %18 = arith.extf %17 : vector<24x8xbf16> to vector<24x8xf32>
    %c192 = arith.constant 192 : index
    %c0_3 = arith.constant 0 : index
    %19 = vector.load %arg1[%c192, %c0_3] : memref<216x128xbf16, #tpu.memory_space<vmem>>, vector<1x8xbf16>
    %20 = arith.extf %19 : vector<1x8xbf16> to vector<1x8xf32>
    %cst = arith.constant 0.000000e+00 : f32
    %21 = vector.broadcast %cst : f32 to vector<32x8xf32>
    %cst_4 = arith.constant 0.000000e+00 : f32
    %22 = vector.broadcast %cst_4 : f32 to vector<32x8xf32>
    %23 = vector.extract_strided_slice %18 {offsets = [0, 0], sizes = [1, 8], strides = [1, 1]} : vector<24x8xf32> to vector<1x8xf32>
    %24 = vector.broadcast %4 : vector<32x1xf32> to vector<32x8xf32>
    %25 = vector.broadcast %23 : vector<1x8xf32> to vector<32x8xf32>
    %26 = arith.mulf %24, %25 : vector<32x8xf32>
    %27 = arith.addf %22, %26 : vector<32x8xf32>
    %28 = vector.extract_strided_slice %18 {offsets = [1, 0], sizes = [1, 8], strides = [1, 1]} : vector<24x8xf32> to vector<1x8xf32>
    %29 = vector.broadcast %8 : vector<32x1xf32> to vector<32x8xf32>
    %30 = vector.broadcast %28 : vector<1x8xf32> to vector<32x8xf32>
    %31 = arith.mulf %29, %30 : vector<32x8xf32>
    %32 = arith.addf %27, %31 : vector<32x8xf32>
    %33 = vector.extract_strided_slice %18 {offsets = [2, 0], sizes = [1, 8], strides = [1, 1]} : vector<24x8xf32> to vector<1x8xf32>
    %34 = vector.broadcast %12 : vector<32x1xf32> to vector<32x8xf32>
    %35 = vector.broadcast %33 : vector<1x8xf32> to vector<32x8xf32>
    %36 = arith.mulf %34, %35 : vector<32x8xf32>
    %37 = arith.addf %32, %36 : vector<32x8xf32>
    %38 = vector.extract_strided_slice %18 {offsets = [3, 0], sizes = [1, 8], strides = [1, 1]} : vector<24x8xf32> to vector<1x8xf32>
    %39 = vector.broadcast %16 : vector<32x1xf32> to vector<32x8xf32>
    %40 = vector.broadcast %38 : vector<1x8xf32> to vector<32x8xf32>
    %41 = arith.mulf %39, %40 : vector<32x8xf32>
    %42 = arith.addf %37, %41 : vector<32x8xf32>
    %43 = arith.addf %21, %42 : vector<32x8xf32>
    %cst_5 = arith.constant 0.000000e+00 : f32
    %44 = vector.broadcast %cst_5 : f32 to vector<32x8xf32>
    %45 = vector.extract_strided_slice %18 {offsets = [4, 0], sizes = [1, 8], strides = [1, 1]} : vector<24x8xf32> to vector<1x8xf32>
    %46 = vector.broadcast %4 : vector<32x1xf32> to vector<32x8xf32>
    %47 = vector.broadcast %45 : vector<1x8xf32> to vector<32x8xf32>
    %48 = arith.mulf %46, %47 : vector<32x8xf32>
    %49 = arith.addf %44, %48 : vector<32x8xf32>
    %50 = vector.extract_strided_slice %18 {offsets = [5, 0], sizes = [1, 8], strides = [1, 1]} : vector<24x8xf32> to vector<1x8xf32>
    %51 = vector.broadcast %8 : vector<32x1xf32> to vector<32x8xf32>
    %52 = vector.broadcast %50 : vector<1x8xf32> to vector<32x8xf32>
    %53 = arith.mulf %51, %52 : vector<32x8xf32>
    %54 = arith.addf %49, %53 : vector<32x8xf32>
    %55 = vector.extract_strided_slice %18 {offsets = [6, 0], sizes = [1, 8], strides = [1, 1]} : vector<24x8xf32> to vector<1x8xf32>
    %56 = vector.broadcast %12 : vector<32x1xf32> to vector<32x8xf32>
    %57 = vector.broadcast %55 : vector<1x8xf32> to vector<32x8xf32>
    %58 = arith.mulf %56, %57 : vector<32x8xf32>
    %59 = arith.addf %54, %58 : vector<32x8xf32>
    %60 = vector.extract_strided_slice %18 {offsets = [7, 0], sizes = [1, 8], strides = [1, 1]} : vector<24x8xf32> to vector<1x8xf32>
    %61 = vector.broadcast %16 : vector<32x1xf32> to vector<32x8xf32>
    %62 = vector.broadcast %60 : vector<1x8xf32> to vector<32x8xf32>
    %63 = arith.mulf %61, %62 : vector<32x8xf32>
    %64 = arith.addf %59, %63 : vector<32x8xf32>
    %c31_i32 = arith.constant 31 : i32
    %65 = tpu.dynamic_rotate %64 by %c31_i32 dim 0 : vector<32x8xf32>, i32 -> vector<32x8xf32>
    %66 = arith.addf %43, %65 : vector<32x8xf32>
    %cst_6 = arith.constant 0.000000e+00 : f32
    %67 = vector.broadcast %cst_6 : f32 to vector<32x8xf32>
    %68 = vector.extract_strided_slice %18 {offsets = [8, 0], sizes = [1, 8], strides = [1, 1]} : vector<24x8xf32> to vector<1x8xf32>
    %69 = vector.broadcast %4 : vector<32x1xf32> to vector<32x8xf32>
    %70 = vector.broadcast %68 : vector<1x8xf32> to vector<32x8xf32>
    %71 = arith.mulf %69, %70 : vector<32x8xf32>
    %72 = arith.addf %67, %71 : vector<32x8xf32>
    %73 = vector.extract_strided_slice %18 {offsets = [9, 0], sizes = [1, 8], strides = [1, 1]} : vector<24x8xf32> to vector<1x8xf32>
    %74 = vector.broadcast %8 : vector<32x1xf32> to vector<32x8xf32>
    %75 = vector.broadcast %73 : vector<1x8xf32> to vector<32x8xf32>
    %76 = arith.mulf %74, %75 : vector<32x8xf32>
    %77 = arith.addf %72, %76 : vector<32x8xf32>
    %78 = vector.extract_strided_slice %18 {offsets = [10, 0], sizes = [1, 8], strides = [1, 1]} : vector<24x8xf32> to vector<1x8xf32>
    %79 = vector.broadcast %12 : vector<32x1xf32> to vector<32x8xf32>
    %80 = vector.broadcast %78 : vector<1x8xf32> to vector<32x8xf32>
    %81 = arith.mulf %79, %80 : vector<32x8xf32>
    %82 = arith.addf %77, %81 : vector<32x8xf32>
    %83 = vector.extract_strided_slice %18 {offsets = [11, 0], sizes = [1, 8], strides = [1, 1]} : vector<24x8xf32> to vector<1x8xf32>
    %84 = vector.broadcast %16 : vector<32x1xf32> to vector<32x8xf32>
    %85 = vector.broadcast %83 : vector<1x8xf32> to vector<32x8xf32>
    %86 = arith.mulf %84, %85 : vector<32x8xf32>
    %87 = arith.addf %82, %86 : vector<32x8xf32>
    %c30_i32 = arith.constant 30 : i32
    %88 = tpu.dynamic_rotate %87 by %c30_i32 dim 0 : vector<32x8xf32>, i32 -> vector<32x8xf32>
    %89 = arith.addf %66, %88 : vector<32x8xf32>
    %cst_7 = arith.constant 0.000000e+00 : f32
    %90 = vector.broadcast %cst_7 : f32 to vector<32x8xf32>
    %91 = vector.extract_strided_slice %18 {offsets = [12, 0], sizes = [1, 8], strides = [1, 1]} : vector<24x8xf32> to vector<1x8xf32>
    %92 = vector.broadcast %4 : vector<32x1xf32> to vector<32x8xf32>
    %93 = vector.broadcast %91 : vector<1x8xf32> to vector<32x8xf32>
    %94 = arith.mulf %92, %93 : vector<32x8xf32>
    %95 = arith.addf %90, %94 : vector<32x8xf32>
    %96 = vector.extract_strided_slice %18 {offsets = [13, 0], sizes = [1, 8], strides = [1, 1]} : vector<24x8xf32> to vector<1x8xf32>
    %97 = vector.broadcast %8 : vector<32x1xf32> to vector<32x8xf32>
    %98 = vector.broadcast %96 : vector<1x8xf32> to vector<32x8xf32>
    %99 = arith.mulf %97, %98 : vector<32x8xf32>
    %100 = arith.addf %95, %99 : vector<32x8xf32>
    %101 = vector.extract_strided_slice %18 {offsets = [14, 0], sizes = [1, 8], strides = [1, 1]} : vector<24x8xf32> to vector<1x8xf32>
    %102 = vector.broadcast %12 : vector<32x1xf32> to vector<32x8xf32>
    %103 = vector.broadcast %101 : vector<1x8xf32> to vector<32x8xf32>
    %104 = arith.mulf %102, %103 : vector<32x8xf32>
    %105 = arith.addf %100, %104 : vector<32x8xf32>
    %106 = vector.extract_strided_slice %18 {offsets = [15, 0], sizes = [1, 8], strides = [1, 1]} : vector<24x8xf32> to vector<1x8xf32>
    %107 = vector.broadcast %16 : vector<32x1xf32> to vector<32x8xf32>
    %108 = vector.broadcast %106 : vector<1x8xf32> to vector<32x8xf32>
    %109 = arith.mulf %107, %108 : vector<32x8xf32>
    %110 = arith.addf %105, %109 : vector<32x8xf32>
    %c29_i32 = arith.constant 29 : i32
    %111 = tpu.dynamic_rotate %110 by %c29_i32 dim 0 : vector<32x8xf32>, i32 -> vector<32x8xf32>
    %112 = arith.addf %89, %111 : vector<32x8xf32>
    %cst_8 = arith.constant 0.000000e+00 : f32
    %113 = vector.broadcast %cst_8 : f32 to vector<32x8xf32>
    %114 = vector.extract_strided_slice %18 {offsets = [16, 0], sizes = [1, 8], strides = [1, 1]} : vector<24x8xf32> to vector<1x8xf32>
    %115 = vector.broadcast %4 : vector<32x1xf32> to vector<32x8xf32>
    %116 = vector.broadcast %114 : vector<1x8xf32> to vector<32x8xf32>
    %117 = arith.mulf %115, %116 : vector<32x8xf32>
    %118 = arith.addf %113, %117 : vector<32x8xf32>
    %119 = vector.extract_strided_slice %18 {offsets = [17, 0], sizes = [1, 8], strides = [1, 1]} : vector<24x8xf32> to vector<1x8xf32>
    %120 = vector.broadcast %8 : vector<32x1xf32> to vector<32x8xf32>
    %121 = vector.broadcast %119 : vector<1x8xf32> to vector<32x8xf32>
    %122 = arith.mulf %120, %121 : vector<32x8xf32>
    %123 = arith.addf %118, %122 : vector<32x8xf32>
    %124 = vector.extract_strided_slice %18 {offsets = [18, 0], sizes = [1, 8], strides = [1, 1]} : vector<24x8xf32> to vector<1x8xf32>
    %125 = vector.broadcast %12 : vector<32x1xf32> to vector<32x8xf32>
    %126 = vector.broadcast %124 : vector<1x8xf32> to vector<32x8xf32>
    %127 = arith.mulf %125, %126 : vector<32x8xf32>
    %128 = arith.addf %123, %127 : vector<32x8xf32>
    %129 = vector.extract_strided_slice %18 {offsets = [19, 0], sizes = [1, 8], strides = [1, 1]} : vector<24x8xf32> to vector<1x8xf32>
    %130 = vector.broadcast %16 : vector<32x1xf32> to vector<32x8xf32>
    %131 = vector.broadcast %129 : vector<1x8xf32> to vector<32x8xf32>
    %132 = arith.mulf %130, %131 : vector<32x8xf32>
    %133 = arith.addf %128, %132 : vector<32x8xf32>
    %c28_i32 = arith.constant 28 : i32
    %134 = tpu.dynamic_rotate %133 by %c28_i32 dim 0 : vector<32x8xf32>, i32 -> vector<32x8xf32>
    %135 = arith.addf %112, %134 : vector<32x8xf32>
    %136 = vector.broadcast %20 : vector<1x8xf32> to vector<32x8xf32>
    %137 = arith.addf %135, %136 : vector<32x8xf32>
    %cst_9 = arith.constant 0.000000e+00 : f32
    %138 = vector.broadcast %cst_9 : f32 to vector<32x8xf32>
    %139 = arith.maximumf %137, %138 : vector<32x8xf32>
    %c200 = arith.constant 200 : index
    %c0_10 = arith.constant 0 : index
    %140 = vector.load %arg1[%c200, %c0_10] : memref<216x128xbf16, #tpu.memory_space<vmem>>, vector<1x16xbf16>
    %141 = arith.extf %140 : vector<1x16xbf16> to vector<1x16xf32>
    %cst_11 = arith.constant 0.000000e+00 : f32
    %142 = vector.broadcast %cst_11 : f32 to vector<32x16xf32>
    %c24 = arith.constant 24 : index
    %c0_12 = arith.constant 0 : index
    %143 = vector.load %arg1[%c24, %c0_12] : memref<216x128xbf16, #tpu.memory_space<vmem>>, vector<8x16xbf16>
    %144 = arith.truncf %139 : vector<32x8xf32> to vector<32x8xbf16>
    %cst_13 = arith.constant dense<0.000000e+00> : vector<32x16xf32>
    %145 = tpu.matmul %144, %143, %cst_13 {dimension_numbers = #tpu.dot_dimension_numbers<[1], [0], [0], [1], [0, 0, 1, 1], [], []>} : vector<32x8xbf16>, vector<8x16xbf16>, vector<32x16xf32> -> vector<32x16xf32>
    %146 = arith.addf %142, %145 : vector<32x16xf32>
    %c31_i32_14 = arith.constant 31 : i32
    %147 = tpu.dynamic_rotate %139 by %c31_i32_14 dim 0 : vector<32x8xf32>, i32 -> vector<32x8xf32>
    %c32 = arith.constant 32 : index
    %c0_15 = arith.constant 0 : index
    %148 = vector.load %arg1[%c32, %c0_15] : memref<216x128xbf16, #tpu.memory_space<vmem>>, vector<8x16xbf16>
    %149 = arith.truncf %147 : vector<32x8xf32> to vector<32x8xbf16>
    %cst_16 = arith.constant dense<0.000000e+00> : vector<32x16xf32>
    %150 = tpu.matmul %149, %148, %cst_16 {dimension_numbers = #tpu.dot_dimension_numbers<[1], [0], [0], [1], [0, 0, 1, 1], [], []>} : vector<32x8xbf16>, vector<8x16xbf16>, vector<32x16xf32> -> vector<32x16xf32>
    %151 = arith.addf %146, %150 : vector<32x16xf32>
    %c30_i32_17 = arith.constant 30 : i32
    %152 = tpu.dynamic_rotate %139 by %c30_i32_17 dim 0 : vector<32x8xf32>, i32 -> vector<32x8xf32>
    %c40 = arith.constant 40 : index
    %c0_18 = arith.constant 0 : index
    %153 = vector.load %arg1[%c40, %c0_18] : memref<216x128xbf16, #tpu.memory_space<vmem>>, vector<8x16xbf16>
    %154 = arith.truncf %152 : vector<32x8xf32> to vector<32x8xbf16>
    %cst_19 = arith.constant dense<0.000000e+00> : vector<32x16xf32>
    %155 = tpu.matmul %154, %153, %cst_19 {dimension_numbers = #tpu.dot_dimension_numbers<[1], [0], [0], [1], [0, 0, 1, 1], [], []>} : vector<32x8xbf16>, vector<8x16xbf16>, vector<32x16xf32> -> vector<32x16xf32>
    %156 = arith.addf %151, %155 : vector<32x16xf32>
    %c29_i32_20 = arith.constant 29 : i32
    %157 = tpu.dynamic_rotate %139 by %c29_i32_20 dim 0 : vector<32x8xf32>, i32 -> vector<32x8xf32>
    %c48 = arith.constant 48 : index
    %c0_21 = arith.constant 0 : index
    %158 = vector.load %arg1[%c48, %c0_21] : memref<216x128xbf16, #tpu.memory_space<vmem>>, vector<8x16xbf16>
    %159 = arith.truncf %157 : vector<32x8xf32> to vector<32x8xbf16>
    %cst_22 = arith.constant dense<0.000000e+00> : vector<32x16xf32>
    %160 = tpu.matmul %159, %158, %cst_22 {dimension_numbers = #tpu.dot_dimension_numbers<[1], [0], [0], [1], [0, 0, 1, 1], [], []>} : vector<32x8xbf16>, vector<8x16xbf16>, vector<32x16xf32> -> vector<32x16xf32>
    %161 = arith.addf %156, %160 : vector<32x16xf32>
    %c28_i32_23 = arith.constant 28 : i32
    %162 = tpu.dynamic_rotate %139 by %c28_i32_23 dim 0 : vector<32x8xf32>, i32 -> vector<32x8xf32>
    %c56 = arith.constant 56 : index
    %c0_24 = arith.constant 0 : index
    %163 = vector.load %arg1[%c56, %c0_24] : memref<216x128xbf16, #tpu.memory_space<vmem>>, vector<8x16xbf16>
    %164 = arith.truncf %162 : vector<32x8xf32> to vector<32x8xbf16>
    %cst_25 = arith.constant dense<0.000000e+00> : vector<32x16xf32>
    %165 = tpu.matmul %164, %163, %cst_25 {dimension_numbers = #tpu.dot_dimension_numbers<[1], [0], [0], [1], [0, 0, 1, 1], [], []>} : vector<32x8xbf16>, vector<8x16xbf16>, vector<32x16xf32> -> vector<32x16xf32>
    %166 = arith.addf %161, %165 : vector<32x16xf32>
    %167 = vector.broadcast %141 : vector<1x16xf32> to vector<32x16xf32>
    %168 = arith.addf %166, %167 : vector<32x16xf32>
    %cst_26 = arith.constant 0.000000e+00 : f32
    %169 = vector.broadcast %cst_26 : f32 to vector<32x16xf32>
    %170 = arith.maximumf %168, %169 : vector<32x16xf32>
    %c64 = arith.constant 64 : index
    %c0_27 = arith.constant 0 : index
    %171 = vector.load %arg1[%c64, %c0_27] : memref<216x128xbf16, #tpu.memory_space<vmem>>, vector<128x32xbf16>
    %c208 = arith.constant 208 : index
    %c0_28 = arith.constant 0 : index
    %172 = vector.load %arg1[%c208, %c0_28] : memref<216x128xbf16, #tpu.memory_space<vmem>>, vector<1x32xbf16>
    %173 = arith.extf %172 : vector<1x32xbf16> to vector<1x32xf32>
    %174 = vector.shape_cast %170 : vector<32x16xf32> to vector<2x16x16xf32>
    %175 = vector.extract_strided_slice %174 {offsets = [0, 0, 0], sizes = [2, 8, 16], strides = [1, 1, 1]} : vector<2x16x16xf32> to vector<2x8x16xf32>
    %176 = vector.shape_cast %175 : vector<2x8x16xf32> to vector<2x128xf32>
    %177 = arith.truncf %176 : vector<2x128xf32> to vector<2x128xbf16>
    %cst_29 = arith.constant dense<0.000000e+00> : vector<2x32xf32>
    %178 = tpu.matmul %177, %171, %cst_29 {dimension_numbers = #tpu.dot_dimension_numbers<[1], [0], [0], [1], [0, 0, 1, 1], [], []>} : vector<2x128xbf16>, vector<128x32xbf16>, vector<2x32xf32> -> vector<2x32xf32>
    %179 = vector.broadcast %173 : vector<1x32xf32> to vector<2x32xf32>
    %180 = arith.addf %178, %179 : vector<2x32xf32>
    %c0_30 = arith.constant 0 : index
    %c0_31 = arith.constant 0 : index
    %181 = vector.load %arg2[%c0_30, %c0_31] : memref<2x32xf32, #tpu.memory_space<vmem>>, vector<2x32xf32>
    tpu.vector_store %arg2[%c0_30, %c0_31], %180 {strides = array<i32>} : memref<2x32xf32, #tpu.memory_space<vmem>>, vector<2x32xf32>,
    return
  }
}

</mosaic_0001>

<llo_original>
// kernel: cnn_backbone_forward.1
$region0: #{cnn_backbone_forward.1}
  #allocation0 [shape = 'u32[]', space=smem, size = 0x4, offset = 0x4, fixed_abs, tag = 'smem constant byte address 0x4 - core index']
  #allocation1 [shape = 'u32[144,128]{1,0:T(1,128)}', space=vmem, size = 0x12000, scoped, tag = 'internal scratch']
  %s0 = inlined_call_operand.vmem [shape: s32[32,1], index: 0, kind: input, shape index: {}]
  %s1 = inlined_call_operand.hbm [shape: bf16[216,128], index: 1, kind: input, shape index: {}]
  %s2 = inlined_call_operand.hbm [shape: f32[2,32], index: 2, kind: output, shape index: {}]
  %s3 = sld [smem:[#allocation0]]
  $region22: #{cnn_backbone_forward.1} parent=0
    _
  %s5 = ssub.s32 1, %s3
  %s6 = scalar_select 0, %s5, %s3
  $region1: #{cnn_backbone_forward.1} parent=0
    #allocation2 [shape = 'u8[55296]{0}', space=vmem, size = 0xd800, scoped, tag = 'input window, operand 1, single buffered']
    #allocation3 [shape = 's32[1]{0}', space=sflag, size = 0x4, scoped, tag = 'scoped memory for cnn_backbone_forward.1']
    #allocation4 [shape = 's32[1]{0}', space=sflag, size = 0x4, scoped, tag = 'scoped memory for cnn_backbone_forward.1']
    #allocation5 [shape = 'u8[1024]{0}', space=vmem, size = 0x400, scoped, tag = 'output window, operand 0, single buffered']
    %7 = vsyncpa [#allocation3], 0
    %8 = vsyncpa [#allocation4], 0
    // Predicated region
    $region2: #{cnn_backbone_forward.1} parent=1 // pred_check
      _
    $region3: #{cnn_backbone_forward.1} parent=1 // pred_check_branch
      %10 = sbr.rel (0) target = $region5
    $region4: #{cnn_backbone_forward.1} parent=1 // pred_region
      _
    $region5: #{cnn_backbone_forward.1} parent=1 // pred_fallthru
      _
    // Predicated region
    $region6: #{cnn_backbone_forward.1} parent=1 // pred_check
      _
    $region7: #{cnn_backbone_forward.1} parent=1 // pred_check_branch
      %12 = sbr.rel (0) target = $region9
    $region8: #{cnn_backbone_forward.1} parent=1 // pred_region
      %s14 = ssub.s32 1728, 1728
      %15 = vsyncadd [#allocation3], %s14
      %s16 = sshll.u32 [#allocation2], 4
      %s17 = int_to_ptr.vmem [resolvable:$true] %s16
      %22 = dma.hbm_to_vmem [thread:$0]  %s1, 1728, %s17, [#allocation3], 64, 64, 4
    $region9: #{cnn_backbone_forward.1} parent=1 // pred_fallthru
      _
    // Predicated region
    $region10: #{cnn_backbone_forward.1} parent=1 // pred_check
      _
    $region11: #{cnn_backbone_forward.1} parent=1 // pred_check_branch
      %24 = sbr.rel (0) target = $region13
    $region12: #{cnn_backbone_forward.1} parent=1 // pred_region
      %25 = dma.done [#allocation3], 1728
    $region13: #{cnn_backbone_forward.1} parent=1 // pred_fallthru
      _
    %v27 = vld [vmem:[%s0] sm:$0xff]
    %v28 = vld [vmem:[%s0 + $0x8] sm:$0xff]
    %v29 = vld [vmem:[%s0 + $0x10] sm:$0xff]
    %v30 = vld [vmem:[%s0 + $0x18] sm:$0xff]
    %vm31 = vcmp.eq.s32.totalorder %v27, 0
    %vm32 = vcmp.eq.s32.totalorder %v28, 0
    %vm33 = vcmp.eq.s32.totalorder %v29, 0
    %vm34 = vcmp.eq.s32.totalorder %v30, 0
    %v35 = vsel %vm31, 1, 0
    %v36 = vsel %vm32, 1, 0
    %v37 = vsel %vm33, 1, 0
    %v38 = vsel %vm34, 1, 0
    %v39 = vcvt.s32.f32 %v35
    %v40 = vcvt.s32.f32 %v36
    %v41 = vcvt.s32.f32 %v37
    %v42 = vcvt.s32.f32 %v38
    %vm43 = vcmp.eq.s32.totalorder %v27, 1
    %vm44 = vcmp.eq.s32.totalorder %v28, 1
    %vm45 = vcmp.eq.s32.totalorder %v29, 1
    %vm46 = vcmp.eq.s32.totalorder %v30, 1
    %v47 = vsel %vm43, 1, 0
    %v48 = vsel %vm44, 1, 0
    %v49 = vsel %vm45, 1, 0
    %v50 = vsel %vm46, 1, 0
    %v51 = vcvt.s32.f32 %v47
    %v52 = vcvt.s32.f32 %v48
    %v53 = vcvt.s32.f32 %v49
    %v54 = vcvt.s32.f32 %v50
    %vm55 = vcmp.eq.s32.totalorder %v27, 2
    %vm56 = vcmp.eq.s32.totalorder %v28, 2
    %vm57 = vcmp.eq.s32.totalorder %v29, 2
    %vm58 = vcmp.eq.s32.totalorder %v30, 2
    %v59 = vsel %vm55, 1, 0
    %v60 = vsel %vm56, 1, 0
    %v61 = vsel %vm57, 1, 0
    %v62 = vsel %vm58, 1, 0
    %v63 = vcvt.s32.f32 %v59
    %v64 = vcvt.s32.f32 %v60
    %v65 = vcvt.s32.f32 %v61
    %v66 = vcvt.s32.f32 %v62
    %vm67 = vcmp.eq.s32.totalorder %v27, 3
    %vm68 = vcmp.eq.s32.totalorder %v28, 3
    %vm69 = vcmp.eq.s32.totalorder %v29, 3
    %vm70 = vcmp.eq.s32.totalorder %v30, 3
    %v71 = vsel %vm67, 1, 0
    %v72 = vsel %vm68, 1, 0
    %v73 = vsel %vm69, 1, 0
    %v74 = vsel %vm70, 1, 0
    %v75 = vcvt.s32.f32 %v71
    %v76 = vcvt.s32.f32 %v72
    %v77 = vcvt.s32.f32 %v73
    %v78 = vcvt.s32.f32 %v74
    %v79 = vld [vmem:[#allocation2] sm:$0xf]
    %v80 = vld [vmem:[#allocation2 + $0x4] sm:$0xf]
    %v81 = vld [vmem:[#allocation2 + $0x8] sm:$0xf]
    %v82 = vunpack.c.l.bf16 %v79
    %v83 = vunpack.c.l.bf16 %v80
    %v84 = vunpack.c.l.bf16 %v81
    %v85 = vld [vmem:[#allocation2 + $0x60] sm:$0x1]
    %v86 = vunpack.c.l.bf16 %v85
    %88 = vset.pattern.permute.xlu0 0
    %89 = vperm.xlu0 %88, %v39
    %v90 = vpop.permute.xlu0 %89
    %93 = vset.pattern.permute.xlu0 0
    %94 = vperm.xlu0 %93, %v40
    %v95 = vpop.permute.xlu0 %94
    %98 = vset.pattern.permute.xlu0 0
    %99 = vperm.xlu0 %98, %v41
    %v100 = vpop.permute.xlu0 %99
    %103 = vset.pattern.permute.xlu0 0
    %104 = vperm.xlu0 %103, %v42
    %v105 = vpop.permute.xlu0 %104
    %v107 = vlaneseq
    %v108 = vshrl.u32 %v107, 7
    %v109 = vsub.s32 0, %v108
    %v110 = vrot.slane %v82, %v109
    %v111 = vmul.f32 %v90, %v110
    %v112 = vmul.f32 %v95, %v110
    %v113 = vmul.f32 %v100, %v110
    %v114 = vmul.f32 %v105, %v110
    %v115 = vadd.f32 %v111, 0.0
    %v116 = vadd.f32 %v112, 0.0
    %v117 = vadd.f32 %v113, 0.0
    %v118 = vadd.f32 %v114, 0.0
    %120 = vset.pattern.permute.xlu0 0
    %121 = vperm.xlu0 %120, %v51
    %v122 = vpop.permute.xlu0 %121
    %125 = vset.pattern.permute.xlu0 0
    %126 = vperm.xlu0 %125, %v52
    %v127 = vpop.permute.xlu0 %126
    %130 = vset.pattern.permute.xlu0 0
    %131 = vperm.xlu0 %130, %v53
    %v132 = vpop.permute.xlu0 %131
    %135 = vset.pattern.permute.xlu0 0
    %136 = vperm.xlu0 %135, %v54
    %v137 = vpop.permute.xlu0 %136
    %v139 = vlaneseq
    %v140 = vshrl.u32 %v139, 7
    %v141 = vsub.s32 1, %v140
    %v142 = vrot.slane %v82, %v141
    %v143 = vmul.f32 %v122, %v142
    %v144 = vmul.f32 %v127, %v142
    %v145 = vmul.f32 %v132, %v142
    %v146 = vmul.f32 %v137, %v142
    %v147 = vadd.f32 %v115, %v143
    %v148 = vadd.f32 %v116, %v144
    %v149 = vadd.f32 %v117, %v145
    %v150 = vadd.f32 %v118, %v146
    %152 = vset.pattern.permute.xlu0 0
    %153 = vperm.xlu0 %152, %v63
    %v154 = vpop.permute.xlu0 %153
    %157 = vset.pattern.permute.xlu0 0
    %158 = vperm.xlu0 %157, %v64
    %v159 = vpop.permute.xlu0 %158
    %162 = vset.pattern.permute.xlu0 0
    %163 = vperm.xlu0 %162, %v65
    %v164 = vpop.permute.xlu0 %163
    %167 = vset.pattern.permute.xlu0 0
    %168 = vperm.xlu0 %167, %v66
    %v169 = vpop.permute.xlu0 %168
    %v171 = vlaneseq
    %v172 = vshrl.u32 %v171, 7
    %v173 = vsub.s32 2, %v172
    %v174 = vrot.slane %v82, %v173
    %v175 = vmul.f32 %v154, %v174
    %v176 = vmul.f32 %v159, %v174
    %v177 = vmul.f32 %v164, %v174
    %v178 = vmul.f32 %v169, %v174
    %v179 = vadd.f32 %v147, %v175
    %v180 = vadd.f32 %v148, %v176
    %v181 = vadd.f32 %v149, %v177
    %v182 = vadd.f32 %v150, %v178
    %184 = vset.pattern.permute.xlu0 0
    %185 = vperm.xlu0 %184, %v75
    %v186 = vpop.permute.xlu0 %185
    %189 = vset.pattern.permute.xlu0 0
    %190 = vperm.xlu0 %189, %v76
    %v191 = vpop.permute.xlu0 %190
    %194 = vset.pattern.permute.xlu0 0
    %195 = vperm.xlu0 %194, %v77
    %v196 = vpop.permute.xlu0 %195
    %199 = vset.pattern.permute.xlu0 0
    %200 = vperm.xlu0 %199, %v78
    %v201 = vpop.permute.xlu0 %200
    %v203 = vlaneseq
    %v204 = vshrl.u32 %v203, 7
    %v205 = vsub.s32 3, %v204
    %v206 = vrot.slane %v82, %v205
    %v207 = vmul.f32 %v186, %v206
    %v208 = vmul.f32 %v191, %v206
    %v209 = vmul.f32 %v196, %v206
    %v210 = vmul.f32 %v201, %v206
    %v211 = vadd.f32 %v179, %v207
    %v212 = vadd.f32 %v180, %v208
    %v213 = vadd.f32 %v181, %v209
    %v214 = vadd.f32 %v182, %v210
    %v215 = vadd.f32 %v211, 0.0
    %v216 = vadd.f32 %v212, 0.0
    %v217 = vadd.f32 %v213, 0.0
    %v218 = vadd.f32 %v214, 0.0
    %v219 = vlaneseq
    %v220 = vshrl.u32 %v219, 7
    %v221 = vsub.s32 4, %v220
    %v222 = vrot.slane %v82, %v221
    %v223 = vmul.f32 %v90, %v222
    %v224 = vmul.f32 %v95, %v222
    %v225 = vmul.f32 %v100, %v222
    %v226 = vmul.f32 %v105, %v222
    %v227 = vadd.f32 %v223, 0.0
    %v228 = vadd.f32 %v224, 0.0
    %v229 = vadd.f32 %v225, 0.0
    %v230 = vadd.f32 %v226, 0.0
    %v231 = vlaneseq
    %v232 = vshrl.u32 %v231, 7
    %v233 = vsub.s32 5, %v232
    %v234 = vrot.slane %v82, %v233
    %v235 = vmul.f32 %v122, %v234
    %v236 = vmul.f32 %v127, %v234
    %v237 = vmul.f32 %v132, %v234
    %v238 = vmul.f32 %v137, %v234
    %v239 = vadd.f32 %v227, %v235
    %v240 = vadd.f32 %v228, %v236
    %v241 = vadd.f32 %v229, %v237
    %v242 = vadd.f32 %v230, %v238
    %v243 = vlaneseq
    %v244 = vshrl.u32 %v243, 7
    %v245 = vsub.s32 6, %v244
    %v246 = vrot.slane %v82, %v245
    %v247 = vmul.f32 %v154, %v246
    %v248 = vmul.f32 %v159, %v246
    %v249 = vmul.f32 %v164, %v246
    %v250 = vmul.f32 %v169, %v246
    %v251 = vadd.f32 %v239, %v247
    %v252 = vadd.f32 %v240, %v248
    %v253 = vadd.f32 %v241, %v249
    %v254 = vadd.f32 %v242, %v250
    %v255 = vlaneseq
    %v256 = vshrl.u32 %v255, 7
    %v257 = vsub.s32 7, %v256
    %v258 = vrot.slane %v82, %v257
    %v259 = vmul.f32 %v186, %v258
    %v260 = vmul.f32 %v191, %v258
    %v261 = vmul.f32 %v196, %v258
    %v262 = vmul.f32 %v201, %v258
    %v263 = vadd.f32 %v251, %v259
    %v264 = vadd.f32 %v252, %v260
    %v265 = vadd.f32 %v253, %v261
    %v266 = vadd.f32 %v254, %v262
    %v267 = vrot.slane %v263, 1
    %v268 = vrot.slane %v264, 1
    %v269 = vrot.slane %v265, 1
    %v270 = vrot.slane %v266, 1
    %v271 = vlaneseq
    %v272 = vshrl.u32 %v271, 7
    %vm273 = vcmp.lt.s32.totalorder %v272, 7
    %v274 = vsel %vm273, %v269, %v270
    %v275 = vsel %vm273, %v268, %v269
    %v276 = vsel %vm273, %v267, %v268
    %v277 = vsel %vm273, %v270, %v267
    %v278 = vadd.f32 %v215, %v276
    %v279 = vadd.f32 %v216, %v275
    %v280 = vadd.f32 %v217, %v274
    %v281 = vadd.f32 %v218, %v277
    %v282 = vlaneseq
    %v283 = vshrl.u32 %v282, 7
    %v284 = vsub.s32 0, %v283
    %v285 = vrot.slane %v83, %v284
    %v286 = vmul.f32 %v90, %v285
    %v287 = vmul.f32 %v95, %v285
    %v288 = vmul.f32 %v100, %v285
    %v289 = vmul.f32 %v105, %v285
    %v290 = vadd.f32 %v286, 0.0
    %v291 = vadd.f32 %v287, 0.0
    %v292 = vadd.f32 %v288, 0.0
    %v293 = vadd.f32 %v289, 0.0
    %v294 = vlaneseq
    %v295 = vshrl.u32 %v294, 7
    %v296 = vsub.s32 1, %v295
    %v297 = vrot.slane %v83, %v296
    %v298 = vmul.f32 %v122, %v297
    %v299 = vmul.f32 %v127, %v297
    %v300 = vmul.f32 %v132, %v297
    %v301 = vmul.f32 %v137, %v297
    %v302 = vadd.f32 %v290, %v298
    %v303 = vadd.f32 %v291, %v299
    %v304 = vadd.f32 %v292, %v300
    %v305 = vadd.f32 %v293, %v301
    %v306 = vlaneseq
    %v307 = vshrl.u32 %v306, 7
    %v308 = vsub.s32 2, %v307
    %v309 = vrot.slane %v83, %v308
    %v310 = vmul.f32 %v154, %v309
    %v311 = vmul.f32 %v159, %v309
    %v312 = vmul.f32 %v164, %v309
    %v313 = vmul.f32 %v169, %v309
    %v314 = vadd.f32 %v302, %v310
    %v315 = vadd.f32 %v303, %v311
    %v316 = vadd.f32 %v304, %v312
    %v317 = vadd.f32 %v305, %v313
    %v318 = vlaneseq
    %v319 = vshrl.u32 %v318, 7
    %v320 = vsub.s32 3, %v319
    %v321 = vrot.slane %v83, %v320
    %v322 = vmul.f32 %v186, %v321
    %v323 = vmul.f32 %v191, %v321
    %v324 = vmul.f32 %v196, %v321
    %v325 = vmul.f32 %v201, %v321
    %v326 = vadd.f32 %v314, %v322
    %v327 = vadd.f32 %v315, %v323
    %v328 = vadd.f32 %v316, %v324
    %v329 = vadd.f32 %v317, %v325
    %v330 = vrot.slane %v326, 2
    %v331 = vrot.slane %v327, 2
    %v332 = vrot.slane %v328, 2
    %v333 = vrot.slane %v329, 2
    %vm334 = vcmp.lt.s32.totalorder %v272, 6
    %v335 = vsel %vm334, %v332, %v333
    %v336 = vsel %vm334, %v331, %v332
    %v337 = vsel %vm334, %v330, %v331
    %v338 = vsel %vm334, %v333, %v330
    %v339 = vadd.f32 %v278, %v337
    %v340 = vadd.f32 %v279, %v336
    %v341 = vadd.f32 %v280, %v335
    %v342 = vadd.f32 %v281, %v338
    %v343 = vlaneseq
    %v344 = vshrl.u32 %v343, 7
    %v345 = vsub.s32 4, %v344
    %v346 = vrot.slane %v83, %v345
    %v347 = vmul.f32 %v90, %v346
    %v348 = vmul.f32 %v95, %v346
    %v349 = vmul.f32 %v100, %v346
    %v350 = vmul.f32 %v105, %v346
    %v351 = vadd.f32 %v347, 0.0
    %v352 = vadd.f32 %v348, 0.0
    %v353 = vadd.f32 %v349, 0.0
    %v354 = vadd.f32 %v350, 0.0
    %v355 = vlaneseq
    %v356 = vshrl.u32 %v355, 7
    %v357 = vsub.s32 5, %v356
    %v358 = vrot.slane %v83, %v357
    %v359 = vmul.f32 %v122, %v358
    %v360 = vmul.f32 %v127, %v358
    %v361 = vmul.f32 %v132, %v358
    %v362 = vmul.f32 %v137, %v358
    %v363 = vadd.f32 %v351, %v359
    %v364 = vadd.f32 %v352, %v360
    %v365 = vadd.f32 %v353, %v361
    %v366 = vadd.f32 %v354, %v362
    %v367 = vlaneseq
    %v368 = vshrl.u32 %v367, 7
    %v369 = vsub.s32 6, %v368
    %v370 = vrot.slane %v83, %v369
    %v371 = vmul.f32 %v154, %v370
    %v372 = vmul.f32 %v159, %v370
    %v373 = vmul.f32 %v164, %v370
    %v374 = vmul.f32 %v169, %v370
    %v375 = vadd.f32 %v363, %v371
    %v376 = vadd.f32 %v364, %v372
    %v377 = vadd.f32 %v365, %v373
    %v378 = vadd.f32 %v366, %v374
    %v379 = vlaneseq
    %v380 = vshrl.u32 %v379, 7
    %v381 = vsub.s32 7, %v380
    %v382 = vrot.slane %v83, %v381
    %v383 = vmul.f32 %v186, %v382
    %v384 = vmul.f32 %v191, %v382
    %v385 = vmul.f32 %v196, %v382
    %v386 = vmul.f32 %v201, %v382
    %v387 = vadd.f32 %v375, %v383
    %v388 = vadd.f32 %v376, %v384
    %v389 = vadd.f32 %v377, %v385
    %v390 = vadd.f32 %v378, %v386
    %v391 = vrot.slane %v387, 3
    %v392 = vrot.slane %v388, 3
    %v393 = vrot.slane %v389, 3
    %v394 = vrot.slane %v390, 3
    %vm395 = vcmp.lt.s32.totalorder %v272, 5
    %v396 = vsel %vm395, %v393, %v394
    %v397 = vsel %vm395, %v392, %v393
    %v398 = vsel %vm395, %v391, %v392
    %v399 = vsel %vm395, %v394, %v391
    %v400 = vadd.f32 %v339, %v398
    %v401 = vadd.f32 %v340, %v397
    %v402 = vadd.f32 %v341, %v396
    %v403 = vadd.f32 %v342, %v399
    %v404 = vlaneseq
    %v405 = vshrl.u32 %v404, 7
    %v406 = vsub.s32 0, %v405
    %v407 = vrot.slane %v84, %v406
    %v408 = vmul.f32 %v90, %v407
    %v409 = vmul.f32 %v95, %v407
    %v410 = vmul.f32 %v100, %v407
    %v411 = vmul.f32 %v105, %v407
    %v412 = vadd.f32 %v408, 0.0
    %v413 = vadd.f32 %v409, 0.0
    %v414 = vadd.f32 %v410, 0.0
    %v415 = vadd.f32 %v411, 0.0
    %v416 = vlaneseq
    %v417 = vshrl.u32 %v416, 7
    %v418 = vsub.s32 1, %v417
    %v419 = vrot.slane %v84, %v418
    %v420 = vmul.f32 %v122, %v419
    %v421 = vmul.f32 %v127, %v419
    %v422 = vmul.f32 %v132, %v419
    %v423 = vmul.f32 %v137, %v419
    %v424 = vadd.f32 %v412, %v420
    %v425 = vadd.f32 %v413, %v421
    %v426 = vadd.f32 %v414, %v422
    %v427 = vadd.f32 %v415, %v423
    %v428 = vlaneseq
    %v429 = vshrl.u32 %v428, 7
    %v430 = vsub.s32 2, %v429
    %v431 = vrot.slane %v84, %v430
    %v432 = vmul.f32 %v154, %v431
    %v433 = vmul.f32 %v159, %v431
    %v434 = vmul.f32 %v164, %v431
    %v435 = vmul.f32 %v169, %v431
    %v436 = vadd.f32 %v424, %v432
    %v437 = vadd.f32 %v425, %v433
    %v438 = vadd.f32 %v426, %v434
    %v439 = vadd.f32 %v427, %v435
    %v440 = vlaneseq
    %v441 = vshrl.u32 %v440, 7
    %v442 = vsub.s32 3, %v441
    %v443 = vrot.slane %v84, %v442
    %v444 = vmul.f32 %v186, %v443
    %v445 = vmul.f32 %v191, %v443
    %v446 = vmul.f32 %v196, %v443
    %v447 = vmul.f32 %v201, %v443
    %v448 = vadd.f32 %v436, %v444
    %v449 = vadd.f32 %v437, %v445
    %v450 = vadd.f32 %v438, %v446
    %v451 = vadd.f32 %v439, %v447
    %v452 = vrot.slane %v448, 4
    %v453 = vrot.slane %v449, 4
    %v454 = vrot.slane %v450, 4
    %v455 = vrot.slane %v451, 4
    %vm456 = vcmp.lt.s32.totalorder %v272, 4
    %v457 = vsel %vm456, %v454, %v455
    %v458 = vsel %vm456, %v453, %v454
    %v459 = vsel %vm456, %v452, %v453
    %v460 = vsel %vm456, %v455, %v452
    %v461 = vadd.f32 %v400, %v459
    %v462 = vadd.f32 %v401, %v458
    %v463 = vadd.f32 %v402, %v457
    %v464 = vadd.f32 %v403, %v460
    %v465 = vlaneseq
    %v466 = vshrl.u32 %v465, 7
    %v467 = vsub.s32 0, %v466
    %v468 = vrot.slane %v86, %v467
    %v469 = vadd.f32 %v461, %v468
    %v470 = vadd.f32 %v462, %v468
    %v471 = vadd.f32 %v463, %v468
    %v472 = vadd.f32 %v464, %v468
    %v473 = vmax.f32 %v469, 0.0
    %v474 = vmax.f32 %v470, 0.0
    %v475 = vmax.f32 %v471, 0.0
    %v476 = vmax.f32 %v472, 0.0
    %v477 = vld [vmem:[#allocation2 + $0x64] sm:$0x1]
    %v478 = vunpack.c.l.bf16 %v477
    %v479 = vld [vmem:[#allocation2 + $0xc] sm:$0xf]
    %v480 = vpack.c.bf16 %v474, %v473
    %v481 = vpack.c.bf16 %v476, %v475
    %v482 = vrot.slane %v473, 1
    %v483 = vrot.slane %v474, 1
    %v484 = vrot.slane %v475, 1
    %v485 = vrot.slane %v476, 1
    %v486 = vsel %vm273, %v484, %v485
    %v487 = vsel %vm273, %v483, %v484
    %v488 = vsel %vm273, %v482, %v483
    %v489 = vsel %vm273, %v485, %v482
    %v490 = vld [vmem:[#allocation2 + $0x10] sm:$0xf]
    %v491 = vpack.c.bf16 %v487, %v488
    %v492 = vpack.c.bf16 %v489, %v486
    %vm493 = vcmask 64512
    %v495 = vsel %vm493, %v491, 0
    %v498 = vsel %vm493, %v492, 0
    %vm500 = vcmask 1043456
    %v502 = vsel %vm500, %v490, 0
    %504 = vmatprep.subr.bf16.mxu0 0
    %505 = vmatpush1.bf16.msra.mxu0 %v502
    %506 = vmatprep.subr.bf16.mxu0 0
    %507 = vmatpush1.bf16.msra.mxu0 0
    %508 = vmatprep.subr.bf16.mxu0 0
    %509 = vmatpush1.bf16.msra.mxu0 0
    %510 = vmatprep.subr.bf16.mxu0 0
    %511 = vmatpush1.bf16.msra.mxu0 0
    %512 = vmatprep.subr.bf16.mxu0 0
    %513 = vmatpush1.bf16.msra.mxu0 0
    %514 = vmatprep.subr.bf16.mxu0 0
    %515 = vmatpush1.bf16.msra.mxu0 0
    %516 = vmatprep.subr.bf16.mxu0 0
    %517 = vmatpush1.bf16.msra.mxu0 0
    %518 = vmatprep.subr.bf16.mxu0 0
    %519 = vmatpush1.bf16.msra.mxu0 0
    %520 = vmatprep.subr.bf16.mxu0 0
    %521 = vmatpush1.bf16.msra.mxu0 0
    %522 = vmatprep.subr.bf16.mxu0 0
    %523 = vmatpush1.bf16.msra.mxu0 0
    %524 = vmatprep.subr.bf16.mxu0 0
    %525 = vmatpush1.bf16.msra.mxu0 0
    %526 = vmatprep.subr.bf16.mxu0 0
    %527 = vmatpush1.bf16.msra.mxu0 0
    %528 = vmatprep.subr.bf16.mxu0 0
    %529 = vmatpush1.bf16.msra.mxu0 0
    %530 = vmatprep.subr.bf16.mxu0 0
    %531 = vmatpush1.bf16.msra.mxu0 0
    %532 = vmatprep.subr.bf16.mxu0 0
    %533 = vmatpush1.bf16.msra.mxu0 0
    %534 = vmatprep.subr.bf16.mxu0 0
    %535 = vmatpush1.bf16.msra.mxu0 0
    %536 = vmatprep.mubr.bf16.mxu0 0
    %537 = vmatmul.mubr.bf16.gmra.mrb[0].mxu0 %v495
    %v538 = vpop.f32.mrb[0].mxu0
    %v539 = vadd.f32 0.0, %v538
    %v540 = vpop.f32.mrb[0].mxu0
    %v541 = vpop.f32.mrb[0].mxu0
    %v542 = vpop.f32.mrb[0].mxu0
    %543 = vmatprep.mubr.bf16.mxu0 0
    %544 = vmatmul.mubr.bf16.gmra.mrb[0].mxu0 %v498
    %v545 = vpop.f32.mrb[0].mxu0
    %v546 = vadd.f32 0.0, %v545
    %v547 = vpop.f32.mrb[0].mxu0
    %v548 = vpop.f32.mrb[0].mxu0
    %v549 = vpop.f32.mrb[0].mxu0
    %550 = vdwg.mxu0
    %v552 = vsel %vm493, %v480, 0
    %v555 = vsel %vm493, %v481, 0
    %v558 = vsel %vm500, %v479, 0
    %560 = vmatprep.subr.bf16.mxu0 0
    %561 = vmatpush1.bf16.msra.mxu0 %v558
    %562 = vmatprep.subr.bf16.mxu0 0
    %563 = vmatpush1.bf16.msra.mxu0 0
    %564 = vmatprep.subr.bf16.mxu0 0
    %565 = vmatpush1.bf16.msra.mxu0 0
    %566 = vmatprep.subr.bf16.mxu0 0
    %567 = vmatpush1.bf16.msra.mxu0 0
    %568 = vmatprep.subr.bf16.mxu0 0
    %569 = vmatpush1.bf16.msra.mxu0 0
    %570 = vmatprep.subr.bf16.mxu0 0
    %571 = vmatpush1.bf16.msra.mxu0 0
    %572 = vmatprep.subr.bf16.mxu0 0
    %573 = vmatpush1.bf16.msra.mxu0 0
    %574 = vmatprep.subr.bf16.mxu0 0
    %575 = vmatpush1.bf16.msra.mxu0 0
    %576 = vmatprep.subr.bf16.mxu0 0
    %577 = vmatpush1.bf16.msra.mxu0 0
    %578 = vmatprep.subr.bf16.mxu0 0
    %579 = vmatpush1.bf16.msra.mxu0 0
    %580 = vmatprep.subr.bf16.mxu0 0
    %581 = vmatpush1.bf16.msra.mxu0 0
    %582 = vmatprep.subr.bf16.mxu0 0
    %583 = vmatpush1.bf16.msra.mxu0 0
    %584 = vmatprep.subr.bf16.mxu0 0
    %585 = vmatpush1.bf16.msra.mxu0 0
    %586 = vmatprep.subr.bf16.mxu0 0
    %587 = vmatpush1.bf16.msra.mxu0 0
    %588 = vmatprep.subr.bf16.mxu0 0
    %589 = vmatpush1.bf16.msra.mxu0 0
    %590 = vmatprep.subr.bf16.mxu0 0
    %591 = vmatpush1.bf16.msra.mxu0 0
    %592 = vmatprep.mubr.bf16.mxu0 0
    %593 = vmatmul.mubr.bf16.gmra.mrb[0].mxu0 %v552
    %v594 = vpop.f32.mrb[0].mxu0
    %v595 = vadd.f32 %v539, %v594
    %v596 = vpop.f32.mrb[0].mxu0
    %v597 = vpop.f32.mrb[0].mxu0
    %v598 = vpop.f32.mrb[0].mxu0
    %599 = vmatprep.mubr.bf16.mxu0 0
    %600 = vmatmul.mubr.bf16.gmra.mrb[0].mxu0 %v555
    %v601 = vpop.f32.mrb[0].mxu0
    %v602 = vadd.f32 %v546, %v601
    %v603 = vpop.f32.mrb[0].mxu0
    %v604 = vpop.f32.mrb[0].mxu0
    %v605 = vpop.f32.mrb[0].mxu0
    %606 = vdwg.mxu0
    %v607 = vrot.slane %v473, 2
    %v608 = vrot.slane %v474, 2
    %v609 = vrot.slane %v475, 2
    %v610 = vrot.slane %v476, 2
    %v611 = vsel %vm334, %v609, %v610
    %v612 = vsel %vm334, %v608, %v609
    %v613 = vsel %vm334, %v607, %v608
    %v614 = vsel %vm334, %v610, %v607
    %v615 = vld [vmem:[#allocation2 + $0x14] sm:$0xf]
    %v616 = vpack.c.bf16 %v612, %v613
    %v617 = vpack.c.bf16 %v614, %v611
    %v619 = vsel %vm493, %v616, 0
    %v622 = vsel %vm493, %v617, 0
    %v625 = vsel %vm500, %v615, 0
    %627 = vmatprep.subr.bf16.mxu0 0
    %628 = vmatpush1.bf16.msra.mxu0 %v625
    %629 = vmatprep.subr.bf16.mxu0 0
    %630 = vmatpush1.bf16.msra.mxu0 0
    %631 = vmatprep.subr.bf16.mxu0 0
    %632 = vmatpush1.bf16.msra.mxu0 0
    %633 = vmatprep.subr.bf16.mxu0 0
    %634 = vmatpush1.bf16.msra.mxu0 0
    %635 = vmatprep.subr.bf16.mxu0 0
    %636 = vmatpush1.bf16.msra.mxu0 0
    %637 = vmatprep.subr.bf16.mxu0 0
    %638 = vmatpush1.bf16.msra.mxu0 0
    %639 = vmatprep.subr.bf16.mxu0 0
    %640 = vmatpush1.bf16.msra.mxu0 0
    %641 = vmatprep.subr.bf16.mxu0 0
    %642 = vmatpush1.bf16.msra.mxu0 0
    %643 = vmatprep.subr.bf16.mxu0 0
    %644 = vmatpush1.bf16.msra.mxu0 0
    %645 = vmatprep.subr.bf16.mxu0 0
    %646 = vmatpush1.bf16.msra.mxu0 0
    %647 = vmatprep.subr.bf16.mxu0 0
    %648 = vmatpush1.bf16.msra.mxu0 0
    %649 = vmatprep.subr.bf16.mxu0 0
    %650 = vmatpush1.bf16.msra.mxu0 0
    %651 = vmatprep.subr.bf16.mxu0 0
    %652 = vmatpush1.bf16.msra.mxu0 0
    %653 = vmatprep.subr.bf16.mxu0 0
    %654 = vmatpush1.bf16.msra.mxu0 0
    %655 = vmatprep.subr.bf16.mxu0 0
    %656 = vmatpush1.bf16.msra.mxu0 0
    %657 = vmatprep.subr.bf16.mxu0 0
    %658 = vmatpush1.bf16.msra.mxu0 0
    %659 = vmatprep.mubr.bf16.mxu0 0
    %660 = vmatmul.mubr.bf16.gmra.mrb[0].mxu0 %v619
    %v661 = vpop.f32.mrb[0].mxu0
    %v662 = vadd.f32 0.0, %v661
    %v663 = vpop.f32.mrb[0].mxu0
    %v664 = vpop.f32.mrb[0].mxu0
    %v665 = vpop.f32.mrb[0].mxu0
    %666 = vmatprep.mubr.bf16.mxu0 0
    %667 = vmatmul.mubr.bf16.gmra.mrb[0].mxu0 %v622
    %v668 = vpop.f32.mrb[0].mxu0
    %v669 = vadd.f32 0.0, %v668
    %v670 = vpop.f32.mrb[0].mxu0
    %v671 = vpop.f32.mrb[0].mxu0
    %v672 = vpop.f32.mrb[0].mxu0
    %673 = vdwg.mxu0
    %v674 = vadd.f32 %v595, %v662
    %v675 = vadd.f32 %v602, %v669
    %v676 = vrot.slane %v473, 3
    %v677 = vrot.slane %v474, 3
    %v678 = vrot.slane %v475, 3
    %v679 = vrot.slane %v476, 3
    %v680 = vsel %vm395, %v678, %v679
    %v681 = vsel %vm395, %v677, %v678
    %v682 = vsel %vm395, %v676, %v677
    %v683 = vsel %vm395, %v679, %v676
    %v684 = vld [vmem:[#allocation2 + $0x18] sm:$0xf]
    %v685 = vpack.c.bf16 %v681, %v682
    %v686 = vpack.c.bf16 %v683, %v680
    %v688 = vsel %vm493, %v685, 0
    %v691 = vsel %vm493, %v686, 0
    %v694 = vsel %vm500, %v684, 0
    %696 = vmatprep.subr.bf16.mxu0 0
    %697 = vmatpush1.bf16.msra.mxu0 %v694
    %698 = vmatprep.subr.bf16.mxu0 0
    %699 = vmatpush1.bf16.msra.mxu0 0
    %700 = vmatprep.subr.bf16.mxu0 0
    %701 = vmatpush1.bf16.msra.mxu0 0
    %702 = vmatprep.subr.bf16.mxu0 0
    %703 = vmatpush1.bf16.msra.mxu0 0
    %704 = vmatprep.subr.bf16.mxu0 0
    %705 = vmatpush1.bf16.msra.mxu0 0
    %706 = vmatprep.subr.bf16.mxu0 0
    %707 = vmatpush1.bf16.msra.mxu0 0
    %708 = vmatprep.subr.bf16.mxu0 0
    %709 = vmatpush1.bf16.msra.mxu0 0
    %710 = vmatprep.subr.bf16.mxu0 0
    %711 = vmatpush1.bf16.msra.mxu0 0
    %712 = vmatprep.subr.bf16.mxu0 0
    %713 = vmatpush1.bf16.msra.mxu0 0
    %714 = vmatprep.subr.bf16.mxu0 0
    %715 = vmatpush1.bf16.msra.mxu0 0
    %716 = vmatprep.subr.bf16.mxu0 0
    %717 = vmatpush1.bf16.msra.mxu0 0
    %718 = vmatprep.subr.bf16.mxu0 0
    %719 = vmatpush1.bf16.msra.mxu0 0
    %720 = vmatprep.subr.bf16.mxu0 0
    %721 = vmatpush1.bf16.msra.mxu0 0
    %722 = vmatprep.subr.bf16.mxu0 0
    %723 = vmatpush1.bf16.msra.mxu0 0
    %724 = vmatprep.subr.bf16.mxu0 0
    %725 = vmatpush1.bf16.msra.mxu0 0
    %726 = vmatprep.subr.bf16.mxu0 0
    %727 = vmatpush1.bf16.msra.mxu0 0
    %728 = vmatprep.mubr.bf16.mxu0 0
    %729 = vmatmul.mubr.bf16.gmra.mrb[0].mxu0 %v688
    %v730 = vpop.f32.mrb[0].mxu0
    %v731 = vadd.f32 0.0, %v730
    %v732 = vpop.f32.mrb[0].mxu0
    %v733 = vpop.f32.mrb[0].mxu0
    %v734 = vpop.f32.mrb[0].mxu0
    %735 = vmatprep.mubr.bf16.mxu0 0
    %736 = vmatmul.mubr.bf16.gmra.mrb[0].mxu0 %v691
    %v737 = vpop.f32.mrb[0].mxu0
    %v738 = vadd.f32 0.0, %v737
    %v739 = vpop.f32.mrb[0].mxu0
    %v740 = vpop.f32.mrb[0].mxu0
    %v741 = vpop.f32.mrb[0].mxu0
    %742 = vdwg.mxu0
    %v743 = vadd.f32 %v674, %v731
    %v744 = vadd.f32 %v675, %v738
    %v745 = vrot.slane %v473, 4
    %v746 = vrot.slane %v474, 4
    %v747 = vrot.slane %v475, 4
    %v748 = vrot.slane %v476, 4
    %v749 = vsel %vm456, %v747, %v748
    %v750 = vsel %vm456, %v746, %v747
    %v751 = vsel %vm456, %v745, %v746
    %v752 = vsel %vm456, %v748, %v745
    %v753 = vld [vmem:[#allocation2 + $0x1c] sm:$0xf]
    %v754 = vpack.c.bf16 %v750, %v751
    %v755 = vpack.c.bf16 %v752, %v749
    %v757 = vsel %vm493, %v754, 0
    %v760 = vsel %vm493, %v755, 0
    %v763 = vsel %vm500, %v753, 0
    %765 = vmatprep.subr.bf16.mxu0 0
    %766 = vmatpush1.bf16.msra.mxu0 %v763
    %767 = vmatprep.subr.bf16.mxu0 0
    %768 = vmatpush1.bf16.msra.mxu0 0
    %769 = vmatprep.subr.bf16.mxu0 0
    %770 = vmatpush1.bf16.msra.mxu0 0
    %771 = vmatprep.subr.bf16.mxu0 0
    %772 = vmatpush1.bf16.msra.mxu0 0
    %773 = vmatprep.subr.bf16.mxu0 0
    %774 = vmatpush1.bf16.msra.mxu0 0
    %775 = vmatprep.subr.bf16.mxu0 0
    %776 = vmatpush1.bf16.msra.mxu0 0
    %777 = vmatprep.subr.bf16.mxu0 0
    %778 = vmatpush1.bf16.msra.mxu0 0
    %779 = vmatprep.subr.bf16.mxu0 0
    %780 = vmatpush1.bf16.msra.mxu0 0
    %781 = vmatprep.subr.bf16.mxu0 0
    %782 = vmatpush1.bf16.msra.mxu0 0
    %783 = vmatprep.subr.bf16.mxu0 0
    %784 = vmatpush1.bf16.msra.mxu0 0
    %785 = vmatprep.subr.bf16.mxu0 0
    %786 = vmatpush1.bf16.msra.mxu0 0
    %787 = vmatprep.subr.bf16.mxu0 0
    %788 = vmatpush1.bf16.msra.mxu0 0
    %789 = vmatprep.subr.bf16.mxu0 0
    %790 = vmatpush1.bf16.msra.mxu0 0
    %791 = vmatprep.subr.bf16.mxu0 0
    %792 = vmatpush1.bf16.msra.mxu0 0
    %793 = vmatprep.subr.bf16.mxu0 0
    %794 = vmatpush1.bf16.msra.mxu0 0
    %795 = vmatprep.subr.bf16.mxu0 0
    %796 = vmatpush1.bf16.msra.mxu0 0
    %797 = vmatprep.mubr.bf16.mxu0 0
    %798 = vmatmul.mubr.bf16.gmra.mrb[0].mxu0 %v757
    %v799 = vpop.f32.mrb[0].mxu0
    %v800 = vadd.f32 0.0, %v799
    %v801 = vpop.f32.mrb[0].mxu0
    %v802 = vpop.f32.mrb[0].mxu0
    %v803 = vpop.f32.mrb[0].mxu0
    %804 = vmatprep.mubr.bf16.mxu0 0
    %805 = vmatmul.mubr.bf16.gmra.mrb[0].mxu0 %v760
    %v806 = vpop.f32.mrb[0].mxu0
    %v807 = vadd.f32 0.0, %v806
    %v808 = vpop.f32.mrb[0].mxu0
    %v809 = vpop.f32.mrb[0].mxu0
    %v810 = vpop.f32.mrb[0].mxu0
    %811 = vdwg.mxu0
    %v812 = vadd.f32 %v743, %v800
    %v813 = vadd.f32 %v744, %v807
    %v814 = vlaneseq
    %v815 = vshrl.u32 %v814, 7
    %v816 = vsub.s32 0, %v815
    %v817 = vrot.slane %v478, %v816
    %v818 = vadd.f32 %v812, %v817
    %v819 = vadd.f32 %v813, %v817
    %v820 = vmax.f32 %v818, 0.0
    %v821 = vmax.f32 %v819, 0.0
    %v822 = vld [vmem:[#allocation2 + $0x20] sm:$0xf]
    %v823 = vld [vmem:[#allocation2 + $0x24] sm:$0xf]
    %v824 = vld [vmem:[#allocation2 + $0x28] sm:$0xf]
    %v825 = vld [vmem:[#allocation2 + $0x2c] sm:$0xf]
    %v826 = vld [vmem:[#allocation2 + $0x30] sm:$0xf]
    %v827 = vld [vmem:[#allocation2 + $0x34] sm:$0xf]
    %v828 = vld [vmem:[#allocation2 + $0x38] sm:$0xf]
    %v829 = vld [vmem:[#allocation2 + $0x3c] sm:$0xf]
    %v830 = vld [vmem:[#allocation2 + $0x40] sm:$0xf]
    %v831 = vld [vmem:[#allocation2 + $0x44] sm:$0xf]
    %v832 = vld [vmem:[#allocation2 + $0x48] sm:$0xf]
    %v833 = vld [vmem:[#allocation2 + $0x4c] sm:$0xf]
    %v834 = vld [vmem:[#allocation2 + $0x50] sm:$0xf]
    %v835 = vld [vmem:[#allocation2 + $0x54] sm:$0xf]
    %v836 = vld [vmem:[#allocation2 + $0x58] sm:$0xf]
    %v837 = vld [vmem:[#allocation2 + $0x5c] sm:$0xf]
    %v838 = vld [vmem:[#allocation2 + $0x68] sm:$0x1]
    %v839 = vunpack.c.l.bf16 %v838
    %v840 = vcombine.high %v820, 0.0
    %v842 = vunpack.c.l.s4 1983009808
    %v843 = vunpack.c.0.s8 %v842
    %v844 = vlaneseq
    %v845 = vshrl.u32 %v844, 7
    %v846 = vsub.s32 %v843, %v845
    %v847 = vrot.slane %v820, %v846
    %v849 = vunpack.c.l.s4 1983009808
    %v850 = vunpack.c.0.s8 %v849
    %v851 = vlaneseq
    %v852 = vshrl.u32 %v851, 7
    %v853 = vsub.s32 %v850, %v852
    %v854 = vrot.slane %v840, %v853
    %v855 = vcombine.high %v821, 0.0
    %v857 = vunpack.c.l.s4 1983009808
    %v858 = vunpack.c.0.s8 %v857
    %v859 = vlaneseq
    %v860 = vshrl.u32 %v859, 7
    %v861 = vsub.s32 %v858, %v860
    %v862 = vrot.slane %v821, %v861
    %v864 = vunpack.c.l.s4 1983009808
    %v865 = vunpack.c.0.s8 %v864
    %v866 = vlaneseq
    %v867 = vshrl.u32 %v866, 7
    %v868 = vsub.s32 %v865, %v867
    %v869 = vrot.slane %v855, %v868
    %v870 = vcombine.low %v847, %v862
    %v871 = vcombine.high %v847, %v862
    %v873 = vunpack.c.l.s4 1934713408
    %v874 = vunpack.c.0.s8 %v873
    %v875 = vlaneseq
    %v876 = vshrl.u32 %v875, 7
    %v877 = vsub.s32 %v874, %v876
    %v878 = vrot.slane %v870, %v877
    %v880 = vunpack.c.l.s4 1934713408
    %v881 = vunpack.c.0.s8 %v880
    %v882 = vlaneseq
    %v883 = vshrl.u32 %v882, 7
    %v884 = vsub.s32 %v881, %v883
    %v885 = vrot.slane %v871, %v884
    %v886 = vcombine.low %v854, %v869
    %v887 = vcombine.high %v854, %v869
    %v889 = vunpack.c.l.s4 1934713408
    %v890 = vunpack.c.0.s8 %v889
    %v891 = vlaneseq
    %v892 = vshrl.u32 %v891, 7
    %v893 = vsub.s32 %v890, %v892
    %v894 = vrot.slane %v886, %v893
    %v896 = vunpack.c.l.s4 1934713408
    %v897 = vunpack.c.0.s8 %v896
    %v898 = vlaneseq
    %v899 = vshrl.u32 %v898, 7
    %v900 = vsub.s32 %v897, %v899
    %v901 = vrot.slane %v887, %v900
    %v902 = vcombine.high %v878, 0.0
    %v903 = vcombine.high %v885, 0.0
    %v904 = vcombine.high %v894, 0.0
    %v905 = vcombine.high %v901, 0.0
    %907 = vrot.lane.b32.xlu0 %v902, 16
    %v908 = vpop.permute.xlu0 %907
    %911 = vrot.lane.b32.xlu0 %v885, 32
    %v912 = vpop.permute.xlu0 %911
    %915 = vrot.lane.b32.xlu0 %v903, 48
    %v916 = vpop.permute.xlu0 %915
    %919 = vrot.lane.b32.xlu0 %v894, 64
    %v920 = vpop.permute.xlu0 %919
    %923 = vrot.lane.b32.xlu0 %v904, 80
    %v924 = vpop.permute.xlu0 %923
    %927 = vrot.lane.b32.xlu0 %v901, 96
    %v928 = vpop.permute.xlu0 %927
    %931 = vrot.lane.b32.xlu0 %v905, 112
    %v932 = vpop.permute.xlu0 %931
    %vm934 = vcmask 130048
    %v935 = vsel %vm934, %v878, %v908
    %vm936 = vcmask 261120
    %v937 = vsel %vm936, %v935, %v912
    %vm938 = vcmask 392192
    %v939 = vsel %vm938, %v937, %v916
    %vm940 = vcmask 523264
    %v941 = vsel %vm940, %v939, %v920
    %vm942 = vcmask 654336
    %v943 = vsel %vm942, %v941, %v924
    %vm944 = vcmask 785408
    %v945 = vsel %vm944, %v943, %v928
    %vm946 = vcmask 916480
    %v947 = vsel %vm946, %v945, %v932
    %v948 = vpack.c.bf16 %v947, %v947
    %v949 = vlaneseq
    %v950 = vshrl.u32 %v949, 7
    %v951 = vsub.s32 0, %v950
    %v952 = vrot.slane %v839, %v951
    %v969 = vunpack.c.l.b16 %v822
    %v970 = vunpack.c.l.b16 %v823
    %v971 = vunpack.c.l.b16 %v824
    %v972 = vunpack.c.l.b16 %v825
    %v973 = vunpack.c.l.b16 %v826
    %v974 = vunpack.c.l.b16 %v827
    %v975 = vunpack.c.l.b16 %v828
    %v976 = vunpack.c.l.b16 %v829
    %v977 = vunpack.c.l.b16 %v830
    %v978 = vunpack.c.l.b16 %v831
    %v979 = vunpack.c.l.b16 %v832
    %v980 = vunpack.c.l.b16 %v833
    %v981 = vunpack.c.l.b16 %v834
    %v982 = vunpack.c.l.b16 %v835
    %v983 = vunpack.c.l.b16 %v836
    %v984 = vunpack.c.l.b16 %v837
    %v985 = vpack.c.b16 %v970, %v969
    %v986 = vpack.c.b16 %v972, %v971
    %v987 = vpack.c.b16 %v974, %v973
    %v988 = vpack.c.b16 %v976, %v975
    %v989 = vpack.c.b16 %v978, %v977
    %v990 = vpack.c.b16 %v980, %v979
    %v991 = vpack.c.b16 %v982, %v981
    %v992 = vpack.c.b16 %v984, %v983
    %1001 = vmatprep.subr.bf16.mxu0 0
    %1002 = vmatpush1.bf16.msra.mxu0 %v985
    %1003 = vmatprep.subr.bf16.mxu0 0
    %1004 = vmatpush1.bf16.msra.mxu0 %v986
    %1005 = vmatprep.subr.bf16.mxu0 0
    %1006 = vmatpush1.bf16.msra.mxu0 %v987
    %1007 = vmatprep.subr.bf16.mxu0 0
    %1008 = vmatpush1.bf16.msra.mxu0 %v988
    %1009 = vmatprep.subr.bf16.mxu0 0
    %1010 = vmatpush1.bf16.msra.mxu0 %v989
    %1011 = vmatprep.subr.bf16.mxu0 0
    %1012 = vmatpush1.bf16.msra.mxu0 %v990
    %1013 = vmatprep.subr.bf16.mxu0 0
    %1014 = vmatpush1.bf16.msra.mxu0 %v991
    %1015 = vmatprep.subr.bf16.mxu0 0
    %1016 = vmatpush1.bf16.msra.mxu0 %v992
    %1017 = vmatprep.subr.bf16.mxu0 0
    %1018 = vmatpush1.bf16.msra.mxu0 0
    %1019 = vmatprep.subr.bf16.mxu0 0
    %1020 = vmatpush1.bf16.msra.mxu0 0
    %1021 = vmatprep.subr.bf16.mxu0 0
    %1022 = vmatpush1.bf16.msra.mxu0 0
    %1023 = vmatprep.subr.bf16.mxu0 0
    %1024 = vmatpush1.bf16.msra.mxu0 0
    %1025 = vmatprep.subr.bf16.mxu0 0
    %1026 = vmatpush1.bf16.msra.mxu0 0
    %1027 = vmatprep.subr.bf16.mxu0 0
    %1028 = vmatpush1.bf16.msra.mxu0 0
    %1029 = vmatprep.subr.bf16.mxu0 0
    %1030 = vmatpush1.bf16.msra.mxu0 0
    %1031 = vmatprep.subr.bf16.mxu0 0
    %1032 = vmatpush1.bf16.msra.mxu0 0
    %1033 = vmatprep.mubr.bf16.mxu0 0
    %1034 = vmatmul.mubr.bf16.gmra.mrb[0].mxu0 %v948
    %v1035 = vpop.f32.mrb[0].mxu0
    %v1036 = vadd.f32 %v952, %v1035
    %v1037 = vpop.f32.mrb[0].mxu0
    %v1038 = vpop.f32.mrb[0].mxu0
    %v1039 = vpop.f32.mrb[0].mxu0
    %1040 = vdwg.mxu0
    %vm1041 = vcmask 254976
    %1042 = vst.msk [vmem:[#allocation5] sm:$0x3] %vm1041, %v1036
    // Predicated region
    $region14: #{cnn_backbone_forward.1} parent=1 // pred_check
      _
    $region15: #{cnn_backbone_forward.1} parent=1 // pred_check_branch
      %1044 = sbr.rel (0) target = $region17
    $region16: #{cnn_backbone_forward.1} parent=1 // pred_region
      %s1046 = ssub.s32 32, 32
      %1047 = vsyncadd [#allocation4], %s1046
      %s1049 = sshll.u32 [#allocation5], 4
      %s1050 = int_to_ptr.vmem [resolvable:$true] %s1049
      %1052 = dma.vmem_to_hbm [thread:$0]  %s1050, 32, %s2, [#allocation4]
    $region17: #{cnn_backbone_forward.1} parent=1 // pred_fallthru
      _
    // Predicated region
    $region18: #{cnn_backbone_forward.1} parent=1 // pred_check
      _
    $region19: #{cnn_backbone_forward.1} parent=1 // pred_check_branch
      %1054 = sbr.rel (0) target = $region21
    $region20: #{cnn_backbone_forward.1} parent=1 // pred_region
      %1055 = dma.done [#allocation4], 32
    $region21: #{cnn_backbone_forward.1} parent=1 // pred_fallthru
      _
    %1056 = vsyncpa [#allocation3], 1
    %1057 = vsyncpa [#allocation4], 1

</llo_original>
